<compile_context>
chip_gen: v7x
topology: tpu7x:2x2x1
jax: 0.10.0
libtpu: 0.0.40
codegen_flags: <defaults>
</compile_context>

<pallas_src>
import math

import jax
import jax.numpy as jnp
from jax.experimental import pallas as pl
from jax.experimental.pallas import tpu as pltpu

NEG_SLOPE = 0.01  # F.leaky_relu default


def _leaky_relu(v):
    # Keep the select in f32: pure VALU work, no bf16 VPU path on v5e.
    return jnp.where(v > 0, v, NEG_SLOPE * v)


def sdne_kernel(adj_ref,
                we0_ref, be0_ref, we1_ref, be1_ref,
                wd0_ref, bd0_ref, wd1_ref, bd1_ref,
                x_ref, z_ref):
    bf16 = jnp.bfloat16

    # ----- encoder: two stacked Linear layers (no activation between) -----
    h = jnp.dot(adj_ref[...].astype(bf16), we0_ref[...],
                preferred_element_type=jnp.float32) + be0_ref[...]
    h = jnp.dot(h.astype(bf16), we1_ref[...],
                preferred_element_type=jnp.float32) + be1_ref[...]
    z = _leaky_relu(h)

    # ----- decoder: two stacked Linear layers (no activation between) -----
    d = jnp.dot(z.astype(bf16), wd0_ref[...],
                preferred_element_type=jnp.float32) + bd0_ref[...]
    d = jnp.dot(d.astype(bf16), wd1_ref[...],
                preferred_element_type=jnp.float32) + bd1_ref[...]
    x = _leaky_relu(d)

    # ----- outputs (both lane-dense) -----
    x_ref[...] = x.astype(x_ref.dtype)
    z_ref[...] = z.astype(z_ref.dtype)


def _pick_tile_b(B, N, half, act_budget_bytes=24 << 20):
    """Largest MXU-friendly batch tile that divides B, prefers >= 2 grid steps
    (megacore), and keeps double-buffered activation tiles within budget."""
    def act_bytes(tb):
        # adj in + x out (tile_b*N each) + z out (tile_b*half), f32, x2 buffers
        return 2 * 4 * (2 * tb * N + tb * half)

    candidates = [c for c in (512, 256, 128, 64, 32, 16, 8)
                  if B % c == 0 and act_bytes(c) <= act_budget_bytes]
    two_step = [c for c in candidates if B // c >= 2]
    if two_step:
        return two_step[0]
    if candidates:
        return candidates[0]
    return B


def _build_sdne_call(B, N, half, hidden, tile_b):
    def row_map(i):
        return (i, 0)

    def fixed_map(i):
        return (0, 0)

    def w_spec(shape):
        # Constant block index -> the pipeline fetches these once and keeps
        # them resident; no re-DMA across grid steps.
        return pl.BlockSpec(shape, fixed_map)

    in_specs = [
        pl.BlockSpec((tile_b, N), row_map),      # adj_batch (batch-tiled)
        w_spec((N, half)),      w_spec((1, half)),    # we0, be0
        w_spec((half, half)),   w_spec((1, half)),    # we1, be1
        w_spec((half, hidden)), w_spec((1, hidden)),  # wd0, bd0
        w_spec((hidden, N)),    w_spec((1, N)),       # wd1, bd1
    ]
    out_specs = (
        pl.BlockSpec((tile_b, N), row_map),      # x
        pl.BlockSpec((tile_b, half), row_map),   # z
    )
    out_shape = (
        jax.ShapeDtypeStruct((B, N), jnp.float32),
        jax.ShapeDtypeStruct((B, half), jnp.float32),
    )

    # Explicit VMEM budget: resident bf16 weights (+f32 biases) x2 buffers +
    # pipelined f32 activation tiles, with headroom; capped at 64 MiB (v7x-safe).
    weight_bytes = 2 * 2 * (N * half + half * half + half * hidden + hidden * N)
    bias_bytes = 2 * 4 * (half + half + hidden + N)
    act_bytes = 2 * 4 * (2 * tile_b * N + tile_b * half)
    budget = int(1.5 * (weight_bytes + bias_bytes + act_bytes)) + (8 << 20)
    vmem_limit = int(min(max(budget, 32 << 20), 64 << 20))

    return pl.pallas_call(
        sdne_kernel,
        out_shape=out_shape,
        grid_spec=pltpu.PrefetchScalarGridSpec(
            num_scalar_prefetch=0,
            grid=(B // tile_b,),
            in_specs=in_specs,
            out_specs=out_specs,
        ),
        compiler_params=pltpu.CompilerParams(
            dimension_semantics=("parallel",),
            vmem_limit_bytes=vmem_limit,
        ),
    )


def sdne_forward(adj_batch, params, *, tile_b=None):
    """Run the SDNE forward pass.  adj_batch: [B, node_size] float32."""
    B, N = adj_batch.shape
    we0, be0, we1, be1, wd0, bd0, wd1, bd1 = params
    half = we0.shape[1]
    hidden = wd0.shape[1]

    if tile_b is None:
        tile_b = _pick_tile_b(B, N, half)
    assert B % tile_b == 0, (B, tile_b)

    bf16 = jnp.bfloat16
    args = (adj_batch.astype(jnp.float32),
            we0.astype(bf16), be0, we1.astype(bf16), be1,
            wd0.astype(bf16), bd0, wd1.astype(bf16), bd1)

    call = _build_sdne_call(B, N, half, hidden, tile_b)
    x, z = call(*args)

    # z_norm outside the kernel: a (B, 1) kernel output would be lane-sparse
    # (masked partial stores); the reduction is trivial in XLA.
    z_norm = jnp.sum(z * z, axis=1, keepdims=True)
    return x, z, z_norm


def xavier_normal(key, fan_in, fan_out):
    # nn.init.xavier_normal_ : std = sqrt(2 / (fan_in + fan_out))
    std = math.sqrt(2.0 / (fan_in + fan_out))
    # stored as [in, out] (transposed from PyTorch's [out, in] Linear weight)
    return std * jax.random.normal(key, (fan_in, fan_out), dtype=jnp.float32)


def init_params(key, node_size, n_hidden):
    half = node_size // 2
    ks = jax.random.split(key, 4)
    # encoder: Linear(N, N/2, bias), Linear(N/2, N/2, bias); biases init to 0
    we0 = xavier_normal(ks[0], node_size, half)
    be0 = jnp.zeros((1, half), jnp.float32)
    we1 = xavier_normal(ks[1], half, half)
    be1 = jnp.zeros((1, half), jnp.float32)
    # decoder: Linear(N/2, H, bias), Linear(H, N); biases init to 0
    wd0 = xavier_normal(ks[2], half, n_hidden)
    bd0 = jnp.zeros((1, n_hidden), jnp.float32)
    wd1 = xavier_normal(ks[3], n_hidden, node_size)
    bd1 = jnp.zeros((1, node_size), jnp.float32)
    return (we0, be0, we1, be1, wd0, bd0, wd1, bd1)


def reference_forward(adj_batch, params):
    """Pure-JAX reference mirroring the PyTorch forward (same bf16 matmul path)."""
    we0, be0, we1, be1, wd0, bd0, wd1, bd1 = params
    bf16 = jnp.bfloat16

    def lin(a, w, b):
        return jnp.dot(a.astype(bf16), w.astype(bf16),
                       preferred_element_type=jnp.float32) + b

    h = lin(adj_batch, we0, be0)
    h = lin(h, we1, be1)
    z = jnp.where(h > 0, h, NEG_SLOPE * h)
    d = lin(z, wd0, bd0)
    d = lin(d, wd1, bd1)
    x = jnp.where(d > 0, d, NEG_SLOPE * d)
    z_norm = jnp.sum(z * z, axis=1, keepdims=True)
    return x, z, z_norm


if __name__ == "__main__":
    # small, hardware-friendly shapes: node_size=256 -> half=128, n_hidden=128
    node_size = 256
    n_hidden = 128
    batch = 16  # -> tile_b = 8, grid=(2,): >=2 steps so megacore can split batch

    key = jax.random.PRNGKey(0)
    k_adj, k_par = jax.random.split(key)
    # synthetic adjacency rows (dense, non-negative like an adjacency matrix)
    adj_batch = (jax.random.uniform(k_adj, (batch, node_size),
                                    dtype=jnp.float32) > 0.8).astype(jnp.float32)
    params = init_params(k_par, node_size, n_hidden)

    x, z, z_norm = sdne_forward(adj_batch, params)
    jax.block_until_ready((x, z, z_norm))

    # correctness check against pure-JAX reference (same bf16 matmul recipe)
    xr, zr, znr = reference_forward(adj_batch, params)
    assert x.shape == (batch, node_size)
    assert z.shape == (batch, node_size // 2)
    assert z_norm.shape == (batch, 1)
    assert jnp.allclose(z, zr, atol=2e-2, rtol=2e-2)
    assert jnp.allclose(x, xr, atol=2e-2, rtol=2e-2)
    assert jnp.allclose(z_norm, znr, atol=5e-2, rtol=2e-2)

    print("KERNEL_OK")
</pallas_src>

<mosaic_0001>
module attributes {stable_mosaic.version = 11 : i64} {
  func.func @sdne_kernel(%arg0: i32, %arg1: memref<8x256xf32, #tpu.memory_space<vmem>>, %arg2: memref<256x128xbf16, #tpu.memory_space<vmem>>, %arg3: memref<1x128xf32, #tpu.memory_space<vmem>>, %arg4: memref<128x128xbf16, #tpu.memory_space<vmem>>, %arg5: memref<1x128xf32, #tpu.memory_space<vmem>>, %arg6: memref<128x128xbf16, #tpu.memory_space<vmem>>, %arg7: memref<1x128xf32, #tpu.memory_space<vmem>>, %arg8: memref<128x256xbf16, #tpu.memory_space<vmem>>, %arg9: memref<1x256xf32, #tpu.memory_space<vmem>>, %arg10: memref<8x256xf32, #tpu.memory_space<vmem>>, %arg11: memref<8x128xf32, #tpu.memory_space<vmem>>) attributes {dimension_semantics = [#tpu.dimension_semantics<parallel>], iteration_bounds = array<i64: 2>, scalar_prefetch = 0 : i64, scratch_operands = 0 : i64, tpu.core_type = #tpu.core_type<tc>, window_params = [{transform_indices = @transform_0, window_bounds = array<i64: 8, 256>}, {pipeline_mode = #tpu.pipeline_mode<synchronous>, transform_indices = @transform_1, window_bounds = array<i64: 256, 128>}, {pipeline_mode = #tpu.pipeline_mode<synchronous>, transform_indices = @transform_2, window_bounds = array<i64: 1, 128>}, {pipeline_mode = #tpu.pipeline_mode<synchronous>, transform_indices = @transform_3, window_bounds = array<i64: 128, 128>}, {pipeline_mode = #tpu.pipeline_mode<synchronous>, transform_indices = @transform_4, window_bounds = array<i64: 1, 128>}, {pipeline_mode = #tpu.pipeline_mode<synchronous>, transform_indices = @transform_5, window_bounds = array<i64: 128, 128>}, {pipeline_mode = #tpu.pipeline_mode<synchronous>, transform_indices = @transform_6, window_bounds = array<i64: 1, 128>}, {pipeline_mode = #tpu.pipeline_mode<synchronous>, transform_indices = @transform_7, window_bounds = array<i64: 128, 256>}, {pipeline_mode = #tpu.pipeline_mode<synchronous>, transform_indices = @transform_8, window_bounds = array<i64: 1, 256>}, {transform_indices = @transform_9, window_bounds = array<i64: 8, 256>}, {transform_indices = @transform_10, window_bounds = array<i64: 8, 128>}]} {
    %c0 = arith.constant 0 : index
    %c0_0 = arith.constant 0 : index
    %0 = vector.load %arg1[%c0, %c0_0] : memref<8x256xf32, #tpu.memory_space<vmem>>, vector<8x256xf32>
    %1 = arith.truncf %0 : vector<8x256xf32> to vector<8x256xbf16>
    %c0_1 = arith.constant 0 : index
    %c0_2 = arith.constant 0 : index
    %2 = vector.load %arg2[%c0_1, %c0_2] : memref<256x128xbf16, #tpu.memory_space<vmem>>, vector<256x128xbf16>
    %cst = arith.constant dense<0.000000e+00> : vector<8x128xf32>
    %3 = tpu.matmul %1, %2, %cst {dimension_numbers = #tpu.dot_dimension_numbers<[1], [0], [0], [1], [0, 0, 1, 1], [], []>} : vector<8x256xbf16>, vector<256x128xbf16>, vector<8x128xf32> -> vector<8x128xf32>
    %c0_3 = arith.constant 0 : index
    %c0_4 = arith.constant 0 : index
    %4 = vector.load %arg3[%c0_3, %c0_4] : memref<1x128xf32, #tpu.memory_space<vmem>>, vector<1x128xf32>
    %5 = vector.broadcast %4 : vector<1x128xf32> to vector<8x128xf32>
    %6 = arith.addf %3, %5 : vector<8x128xf32>
    %7 = arith.truncf %6 : vector<8x128xf32> to vector<8x128xbf16>
    %c0_5 = arith.constant 0 : index
    %c0_6 = arith.constant 0 : index
    %8 = vector.load %arg4[%c0_5, %c0_6] : memref<128x128xbf16, #tpu.memory_space<vmem>>, vector<128x128xbf16>
    %cst_7 = arith.constant dense<0.000000e+00> : vector<8x128xf32>
    %9 = tpu.matmul %7, %8, %cst_7 {dimension_numbers = #tpu.dot_dimension_numbers<[1], [0], [0], [1], [0, 0, 1, 1], [], []>} : vector<8x128xbf16>, vector<128x128xbf16>, vector<8x128xf32> -> vector<8x128xf32>
    %c0_8 = arith.constant 0 : index
    %c0_9 = arith.constant 0 : index
    %10 = vector.load %arg5[%c0_8, %c0_9] : memref<1x128xf32, #tpu.memory_space<vmem>>, vector<1x128xf32>
    %11 = vector.broadcast %10 : vector<1x128xf32> to vector<8x128xf32>
    %12 = arith.addf %9, %11 : vector<8x128xf32>
    %cst_10 = arith.constant 0.000000e+00 : f32
    %13 = vector.broadcast %cst_10 : f32 to vector<8x128xf32>
    %14 = arith.cmpf ogt, %12, %13 : vector<8x128xf32>
    %cst_11 = arith.constant 0.00999999977 : f32
    %15 = vector.broadcast %cst_11 : f32 to vector<8x128xf32>
    %16 = arith.mulf %15, %12 : vector<8x128xf32>
    %17 = arith.select %14, %12, %16 : vector<8x128xi1>, vector<8x128xf32>
    %18 = arith.truncf %17 : vector<8x128xf32> to vector<8x128xbf16>
    %c0_12 = arith.constant 0 : index
    %c0_13 = arith.constant 0 : index
    %19 = vector.load %arg6[%c0_12, %c0_13] : memref<128x128xbf16, #tpu.memory_space<vmem>>, vector<128x128xbf16>
    %cst_14 = arith.constant dense<0.000000e+00> : vector<8x128xf32>
    %20 = tpu.matmul %18, %19, %cst_14 {dimension_numbers = #tpu.dot_dimension_numbers<[1], [0], [0], [1], [0, 0, 1, 1], [], []>} : vector<8x128xbf16>, vector<128x128xbf16>, vector<8x128xf32> -> vector<8x128xf32>
    %c0_15 = arith.constant 0 : index
    %c0_16 = arith.constant 0 : index
    %21 = vector.load %arg7[%c0_15, %c0_16] : memref<1x128xf32, #tpu.memory_space<vmem>>, vector<1x128xf32>
    %22 = vector.broadcast %21 : vector<1x128xf32> to vector<8x128xf32>
    %23 = arith.addf %20, %22 : vector<8x128xf32>
    %24 = arith.truncf %23 : vector<8x128xf32> to vector<8x128xbf16>
    %c0_17 = arith.constant 0 : index
    %c0_18 = arith.constant 0 : index
    %25 = vector.load %arg8[%c0_17, %c0_18] : memref<128x256xbf16, #tpu.memory_space<vmem>>, vector<128x256xbf16>
    %cst_19 = arith.constant dense<0.000000e+00> : vector<8x256xf32>
    %26 = tpu.matmul %24, %25, %cst_19 {dimension_numbers = #tpu.dot_dimension_numbers<[1], [0], [0], [1], [0, 0, 1, 1], [], []>} : vector<8x128xbf16>, vector<128x256xbf16>, vector<8x256xf32> -> vector<8x256xf32>
    %c0_20 = arith.constant 0 : index
    %c0_21 = arith.constant 0 : index
    %27 = vector.load %arg9[%c0_20, %c0_21] : memref<1x256xf32, #tpu.memory_space<vmem>>, vector<1x256xf32>
    %28 = vector.broadcast %27 : vector<1x256xf32> to vector<8x256xf32>
    %29 = arith.addf %26, %28 : vector<8x256xf32>
    %cst_22 = arith.constant 0.000000e+00 : f32
    %30 = vector.broadcast %cst_22 : f32 to vector<8x256xf32>
    %31 = arith.cmpf ogt, %29, %30 : vector<8x256xf32>
    %cst_23 = arith.constant 0.00999999977 : f32
    %32 = vector.broadcast %cst_23 : f32 to vector<8x256xf32>
    %33 = arith.mulf %32, %29 : vector<8x256xf32>
    %34 = arith.select %31, %29, %33 : vector<8x256xi1>, vector<8x256xf32>
    %c0_24 = arith.constant 0 : index
    %c0_25 = arith.constant 0 : index
    %35 = vector.load %arg10[%c0_24, %c0_25] : memref<8x256xf32, #tpu.memory_space<vmem>>, vector<8x256xf32>
    tpu.vector_store %arg10[%c0_24, %c0_25], %34 {strides = array<i32>} : memref<8x256xf32, #tpu.memory_space<vmem>>, vector<8x256xf32>,
    %c0_26 = arith.constant 0 : index
    %c0_27 = arith.constant 0 : index
    %36 = vector.load %arg11[%c0_26, %c0_27] : memref<8x128xf32, #tpu.memory_space<vmem>>, vector<8x128xf32>
    tpu.vector_store %arg11[%c0_26, %c0_27], %17 {strides = array<i32>} : memref<8x128xf32, #tpu.memory_space<vmem>>, vector<8x128xf32>,
    return
  }
  func.func @transform_0(%arg0: i32) -> (i32, i32) {
    %c0_i32 = arith.constant 0 : i32
    %c0_i32_0 = arith.constant 0 : i32
    return %arg0, %c0_i32 : i32, i32
  }
  func.func @transform_1(%arg0: i32) -> (i32, i32) {
    %c0_i32 = arith.constant 0 : i32
    %c0_i32_0 = arith.constant 0 : i32
    %c0_i32_1 = arith.constant 0 : i32
    return %c0_i32, %c0_i32_0 : i32, i32
  }
  func.func @transform_2(%arg0: i32) -> (i32, i32) {
    %c0_i32 = arith.constant 0 : i32
    %c0_i32_0 = arith.constant 0 : i32
    %c0_i32_1 = arith.constant 0 : i32
    return %c0_i32, %c0_i32_0 : i32, i32
  }
  func.func @transform_3(%arg0: i32) -> (i32, i32) {
    %c0_i32 = arith.constant 0 : i32
    %c0_i32_0 = arith.constant 0 : i32
    %c0_i32_1 = arith.constant 0 : i32
    return %c0_i32, %c0_i32_0 : i32, i32
  }
  func.func @transform_4(%arg0: i32) -> (i32, i32) {
    %c0_i32 = arith.constant 0 : i32
    %c0_i32_0 = arith.constant 0 : i32
    %c0_i32_1 = arith.constant 0 : i32
    return %c0_i32, %c0_i32_0 : i32, i32
  }
  func.func @transform_5(%arg0: i32) -> (i32, i32) {
    %c0_i32 = arith.constant 0 : i32
    %c0_i32_0 = arith.constant 0 : i32
    %c0_i32_1 = arith.constant 0 : i32
    return %c0_i32, %c0_i32_0 : i32, i32
  }
  func.func @transform_6(%arg0: i32) -> (i32, i32) {
    %c0_i32 = arith.constant 0 : i32
    %c0_i32_0 = arith.constant 0 : i32
    %c0_i32_1 = arith.constant 0 : i32
    return %c0_i32, %c0_i32_0 : i32, i32
  }
  func.func @transform_7(%arg0: i32) -> (i32, i32) {
    %c0_i32 = arith.constant 0 : i32
    %c0_i32_0 = arith.constant 0 : i32
    %c0_i32_1 = arith.constant 0 : i32
    return %c0_i32, %c0_i32_0 : i32, i32
  }
  func.func @transform_8(%arg0: i32) -> (i32, i32) {
    %c0_i32 = arith.constant 0 : i32
    %c0_i32_0 = arith.constant 0 : i32
    %c0_i32_1 = arith.constant 0 : i32
    return %c0_i32, %c0_i32_0 : i32, i32
  }
  func.func @transform_9(%arg0: i32) -> (i32, i32) {
    %c0_i32 = arith.constant 0 : i32
    %c0_i32_0 = arith.constant 0 : i32
    return %arg0, %c0_i32 : i32, i32
  }
  func.func @transform_10(%arg0: i32) -> (i32, i32) {
    %c0_i32 = arith.constant 0 : i32
    %c0_i32_0 = arith.constant 0 : i32
    return %arg0, %c0_i32 : i32, i32
  }
}

</mosaic_0001>

<llo_original>
// kernel: tpu_custom_call.1
$region0: #{tpu_custom_call.1}
  #allocation0 [shape = 'u32[]', space=smem, size = 0x4, offset = 0x4, fixed_abs, tag = 'smem constant byte address 0x4 - core index']
  #allocation1 [shape = 'u32[144,128]{1,0:T(1,128)}', space=vmem, size = 0x12000, scoped, tag = 'internal scratch']
  %s0 = inlined_call_operand.hbm [shape: f32[16,256], index: 0, kind: input, shape index: {}]
  %s1 = inlined_call_operand.hbm [shape: bf16[256,128], index: 1, kind: input, shape index: {}]
  %s2 = inlined_call_operand.vmem [shape: f32[1,128], index: 2, kind: input, shape index: {}]
  %s3 = inlined_call_operand.hbm [shape: bf16[128,128], index: 3, kind: input, shape index: {}]
  %s4 = inlined_call_operand.vmem [shape: f32[1,128], index: 4, kind: input, shape index: {}]
  %s5 = inlined_call_operand.hbm [shape: bf16[128,128], index: 5, kind: input, shape index: {}]
  %s6 = inlined_call_operand.vmem [shape: f32[1,128], index: 6, kind: input, shape index: {}]
  %s7 = inlined_call_operand.hbm [shape: bf16[128,256], index: 7, kind: input, shape index: {}]
  %s8 = inlined_call_operand.vmem [shape: f32[1,256], index: 8, kind: input, shape index: {}]
  %s9 = inlined_call_operand.hbm [shape: f32[16,256], index: 9, kind: output, shape index: {0}]
  %s10 = inlined_call_operand.hbm [shape: f32[16,128], index: 10, kind: output, shape index: {1}]
  %11 = xla_tuple %s9, %s10
  %s12 = sld [smem:[#allocation0]]
  $region97: #{tpu_custom_call.1} parent=0
    _
  %s14 = ssub.s32 1, %s12
  %s15 = scalar_select 0, %s14, %s12
  $region1: #{tpu_custom_call.1} parent=0
    #allocation2 [shape = 'u8[16384]{0}', space=vmem, size = 0x4000, scoped, tag = 'input window, operand 0']
    #allocation3 [shape = 's32[2]{0}', space=sflag, size = 0x8, scoped, tag = 'scoped memory for tpu_custom_call.1']
    #allocation4 [shape = 's32[2]{0}', space=sflag, size = 0x8, scoped, tag = 'scoped memory for tpu_custom_call.1']
    #allocation5 [shape = 'u8[65536]{0}', space=vmem, size = 0x10000, scoped, tag = 'input window, operand 1, single buffered']
    #allocation6 [shape = 's32[1]{0}', space=sflag, size = 0x4, scoped, tag = 'scoped memory for tpu_custom_call.1']
    #allocation7 [shape = 'u8[32768]{0}', space=vmem, size = 0x8000, scoped, tag = 'input window, operand 3, single buffered']
    #allocation8 [shape = 'u8[32768]{0}', space=vmem, size = 0x8000, scoped, tag = 'input window, operand 5, single buffered']
    #allocation9 [shape = 's32[1]{0}', space=sflag, size = 0x4, scoped, tag = 'scoped memory for tpu_custom_call.1']
    #allocation10 [shape = 'u8[65536]{0}', space=vmem, size = 0x10000, scoped, tag = 'input window, operand 7, single buffered']
    #allocation11 [shape = 'u8[16384]{0}', space=vmem, size = 0x4000, scoped, tag = 'output window, operand 0']
    #allocation12 [shape = 'u8[8192]{0}', space=vmem, size = 0x2000, scoped, tag = 'output window, operand 1']
    #allocation13 [shape = 's32[2]{0}', space=sflag, size = 0x8, scoped, tag = 'scoped memory for tpu_custom_call.1']
    %16 = vsyncpa [#allocation3], 0
    %s17 = scalar_lea.sflag [#allocation3], 1
    %18 = vsyncpa %s17, 0
    %19 = vsyncpa [#allocation6], 0
    %20 = vsyncpa [#allocation9], 0
    %21 = vsyncpa [#allocation4], 0
    %s22 = scalar_lea.sflag [#allocation4], 1
    %23 = vsyncpa %s22, 0
    %24 = vsyncpa [#allocation13], 0
    %s25 = scalar_lea.sflag [#allocation13], 1
    %26 = vsyncpa %s25, 0
    loop: start=0, step=1, limit=4
    $region2: #{tpu_custom_call.1} parent=1 // loop_pre_header
      _
    $region3: #{tpu_custom_call.1} parent=1 // loop_header
      %s28 = sphi 0, %s32
      %p29 = scmp.ge.s32.totalorder %s28, 4
      %s38 = sphi 0, %s40
      %s41 = sphi 0, %s38
      %s42 = sphi 0, %s41
      %s58 = sphi 0, %s42
      %s62 = sphi 0, %s62
      %s64 = sphi 0, %s62
      %s65 = sphi 0, %s64
      %s79 = sphi 0, %s65
      %s83 = sphi 0, %s83
      %s85 = sphi 0, %s83
      %s86 = sphi 0, %s85
      %s100 = sphi 0, %s86
      %s104 = sphi 0, %s104
      %s106 = sphi 0, %s104
      %s107 = sphi 0, %s106
      %s121 = sphi 0, %s107
      %s125 = sphi 0, %s125
      %s127 = sphi 0, %s125
      %s128 = sphi 0, %s127
      %s142 = sphi 0, %s128
      %s146 = sphi 0, %s146
      %s148 = sphi 0, %s146
      %s149 = sphi 0, %s148
      %s163 = sphi 0, %s149
      %s167 = sphi 0, %s167
      %s169 = sphi 0, %s167
      %s170 = sphi 0, %s169
      %s184 = sphi 0, %s170
      %s188 = sphi 0, %s188
      %s190 = sphi 0, %s188
      %s191 = sphi 0, %s190
      %s205 = sphi 0, %s191
      %s209 = sphi 0, %s209
      %s211 = sphi 0, %s209
      %s212 = sphi 0, %s211
      %s226 = sphi 0, %s212
      %s232 = sphi 0, %s234
      %s235 = sphi 0, %s232
      %s236 = sphi 0, %s235
      %s252 = sphi 0, %s236
      %s258 = sphi 0, %s260
      %s261 = sphi 0, %s258
      %s262 = sphi 0, %s261
      %s278 = sphi 0, %s262
    $region4: #{tpu_custom_call.1} parent=1 // loop_header_branch
      %31 = sbr.rel (%p29) target = $region8
    $region5: #{tpu_custom_call.1} parent=1 // loop_body
      %s33 = ssub.s32 %s28, 1
      %s34 = ssub.s32 %s28, 2
      %s35 = sadd.s32 %s28, 1
      %s36 = ssub.s32 %s28, %s35
      %p37 = scmp.eq.s32.totalorder %s36, 0
      %s39 = sadd.s32 %s38, 1
      %s40 = scalar_select %p37, %s38, %s39
      %p43 = pneg %p37
      %p44 = scmp.eq.s32.totalorder %s28, 1
      %p45 = por %p43, %p44
      %p46 = scmp.ne.s32.totalorder %s38, %s41
      %p47 = scmp.eq.s32.totalorder %s28, 0
      %p48 = por %p46, %p47
      %p49 = scmp.ne.s32.totalorder %s38, %s41
      %p50 = scmp.eq.s32.totalorder %s33, 1
      %p51 = por %p49, %p50
      %p52 = scmp.ne.s32.totalorder %s41, %s42
      %p53 = scmp.eq.s32.totalorder %s33, 0
      %p54 = por %p52, %p53
      %p55 = scmp.ne.s32.totalorder %s41, %s42
      %p56 = scmp.eq.s32.totalorder %s34, 1
      %p57 = por %p55, %p56
      %p59 = scmp.ne.s32.totalorder %s42, %s58
      %p60 = scmp.eq.s32.totalorder %s34, 0
      %p61 = por %p59, %p60
      %s63 = sadd.s32 %s62, 1
      %p66 = scmp.eq.s32.totalorder %s28, 1
      %p67 = scmp.ne.s32.totalorder %s62, %s64
      %p68 = scmp.eq.s32.totalorder %s28, 0
      %p69 = por %p67, %p68
      %p70 = scmp.ne.s32.totalorder %s62, %s64
      %p71 = scmp.eq.s32.totalorder %s33, 1
      %p72 = por %p70, %p71
      %p73 = scmp.ne.s32.totalorder %s64, %s65
      %p74 = scmp.eq.s32.totalorder %s33, 0
      %p75 = por %p73, %p74
      %p76 = scmp.ne.s32.totalorder %s64, %s65
      %p77 = scmp.eq.s32.totalorder %s34, 1
      %p78 = por %p76, %p77
      %p80 = scmp.ne.s32.totalorder %s65, %s79
      %p81 = scmp.eq.s32.totalorder %s34, 0
      %p82 = por %p80, %p81
      %s84 = sadd.s32 %s83, 1
      %p87 = scmp.eq.s32.totalorder %s28, 1
      %p88 = scmp.ne.s32.totalorder %s83, %s85
      %p89 = scmp.eq.s32.totalorder %s28, 0
      %p90 = por %p88, %p89
      %p91 = scmp.ne.s32.totalorder %s83, %s85
      %p92 = scmp.eq.s32.totalorder %s33, 1
      %p93 = por %p91, %p92
      %p94 = scmp.ne.s32.totalorder %s85, %s86
      %p95 = scmp.eq.s32.totalorder %s33, 0
      %p96 = por %p94, %p95
      %p97 = scmp.ne.s32.totalorder %s85, %s86
      %p98 = scmp.eq.s32.totalorder %s34, 1
      %p99 = por %p97, %p98
      %p101 = scmp.ne.s32.totalorder %s86, %s100
      %p102 = scmp.eq.s32.totalorder %s34, 0
      %p103 = por %p101, %p102
      %s105 = sadd.s32 %s104, 1
      %p108 = scmp.eq.s32.totalorder %s28, 1
      %p109 = scmp.ne.s32.totalorder %s104, %s106
      %p110 = scmp.eq.s32.totalorder %s28, 0
      %p111 = por %p109, %p110
      %p112 = scmp.ne.s32.totalorder %s104, %s106
      %p113 = scmp.eq.s32.totalorder %s33, 1
      %p114 = por %p112, %p113
      %p115 = scmp.ne.s32.totalorder %s106, %s107
      %p116 = scmp.eq.s32.totalorder %s33, 0
      %p117 = por %p115, %p116
      %p118 = scmp.ne.s32.totalorder %s106, %s107
      %p119 = scmp.eq.s32.totalorder %s34, 1
      %p120 = por %p118, %p119
      %p122 = scmp.ne.s32.totalorder %s107, %s121
      %p123 = scmp.eq.s32.totalorder %s34, 0
      %p124 = por %p122, %p123
      %s126 = sadd.s32 %s125, 1
      %p129 = scmp.eq.s32.totalorder %s28, 1
      %p130 = scmp.ne.s32.totalorder %s125, %s127
      %p131 = scmp.eq.s32.totalorder %s28, 0
      %p132 = por %p130, %p131
      %p133 = scmp.ne.s32.totalorder %s125, %s127
      %p134 = scmp.eq.s32.totalorder %s33, 1
      %p135 = por %p133, %p134
      %p136 = scmp.ne.s32.totalorder %s127, %s128
      %p137 = scmp.eq.s32.totalorder %s33, 0
      %p138 = por %p136, %p137
      %p139 = scmp.ne.s32.totalorder %s127, %s128
      %p140 = scmp.eq.s32.totalorder %s34, 1
      %p141 = por %p139, %p140
      %p143 = scmp.ne.s32.totalorder %s128, %s142
      %p144 = scmp.eq.s32.totalorder %s34, 0
      %p145 = por %p143, %p144
      %s147 = sadd.s32 %s146, 1
      %p150 = scmp.eq.s32.totalorder %s28, 1
      %p151 = scmp.ne.s32.totalorder %s146, %s148
      %p152 = scmp.eq.s32.totalorder %s28, 0
      %p153 = por %p151, %p152
      %p154 = scmp.ne.s32.totalorder %s146, %s148
      %p155 = scmp.eq.s32.totalorder %s33, 1
      %p156 = por %p154, %p155
      %p157 = scmp.ne.s32.totalorder %s148, %s149
      %p158 = scmp.eq.s32.totalorder %s33, 0
      %p159 = por %p157, %p158
      %p160 = scmp.ne.s32.totalorder %s148, %s149
      %p161 = scmp.eq.s32.totalorder %s34, 1
      %p162 = por %p160, %p161
      %p164 = scmp.ne.s32.totalorder %s149, %s163
      %p165 = scmp.eq.s32.totalorder %s34, 0
      %p166 = por %p164, %p165
      %s168 = sadd.s32 %s167, 1
      %p171 = scmp.eq.s32.totalorder %s28, 1
      %p172 = scmp.ne.s32.totalorder %s167, %s169
      %p173 = scmp.eq.s32.totalorder %s28, 0
      %p174 = por %p172, %p173
      %p175 = scmp.ne.s32.totalorder %s167, %s169
      %p176 = scmp.eq.s32.totalorder %s33, 1
      %p177 = por %p175, %p176
      %p178 = scmp.ne.s32.totalorder %s169, %s170
      %p179 = scmp.eq.s32.totalorder %s33, 0
      %p180 = por %p178, %p179
      %p181 = scmp.ne.s32.totalorder %s169, %s170
      %p182 = scmp.eq.s32.totalorder %s34, 1
      %p183 = por %p181, %p182
      %p185 = scmp.ne.s32.totalorder %s170, %s184
      %p186 = scmp.eq.s32.totalorder %s34, 0
      %p187 = por %p185, %p186
      %s189 = sadd.s32 %s188, 1
      %p192 = scmp.eq.s32.totalorder %s28, 1
      %p193 = scmp.ne.s32.totalorder %s188, %s190
      %p194 = scmp.eq.s32.totalorder %s28, 0
      %p195 = por %p193, %p194
      %p196 = scmp.ne.s32.totalorder %s188, %s190
      %p197 = scmp.eq.s32.totalorder %s33, 1
      %p198 = por %p196, %p197
      %p199 = scmp.ne.s32.totalorder %s190, %s191
      %p200 = scmp.eq.s32.totalorder %s33, 0
      %p201 = por %p199, %p200
      %p202 = scmp.ne.s32.totalorder %s190, %s191
      %p203 = scmp.eq.s32.totalorder %s34, 1
      %p204 = por %p202, %p203
      %p206 = scmp.ne.s32.totalorder %s191, %s205
      %p207 = scmp.eq.s32.totalorder %s34, 0
      %p208 = por %p206, %p207
      %s210 = sadd.s32 %s209, 1
      %p213 = scmp.eq.s32.totalorder %s28, 1
      %p214 = scmp.ne.s32.totalorder %s209, %s211
      %p215 = scmp.eq.s32.totalorder %s28, 0
      %p216 = por %p214, %p215
      %p217 = scmp.ne.s32.totalorder %s209, %s211
      %p218 = scmp.eq.s32.totalorder %s33, 1
      %p219 = por %p217, %p218
      %p220 = scmp.ne.s32.totalorder %s211, %s212
      %p221 = scmp.eq.s32.totalorder %s33, 0
      %p222 = por %p220, %p221
      %p223 = scmp.ne.s32.totalorder %s211, %s212
      %p224 = scmp.eq.s32.totalorder %s34, 1
      %p225 = por %p223, %p224
      %p227 = scmp.ne.s32.totalorder %s212, %s226
      %p228 = scmp.eq.s32.totalorder %s34, 0
      %p229 = por %p227, %p228
      %s230 = ssub.s32 %s28, %s35
      %p231 = scmp.eq.s32.totalorder %s230, 0
      %s233 = sadd.s32 %s232, 1
      %s234 = scalar_select %p231, %s232, %s233
      %p237 = pneg %p231
      %p238 = scmp.eq.s32.totalorder %s28, 1
      %p239 = por %p237, %p238
      %p240 = scmp.ne.s32.totalorder %s232, %s235
      %p241 = scmp.eq.s32.totalorder %s28, 0
      %p242 = por %p240, %p241
      %p243 = scmp.ne.s32.totalorder %s232, %s235
      %p244 = scmp.eq.s32.totalorder %s33, 1
      %p245 = por %p243, %p244
      %p246 = scmp.ne.s32.totalorder %s235, %s236
      %p247 = scmp.eq.s32.totalorder %s33, 0
      %p248 = por %p246, %p247
      %p249 = scmp.ne.s32.totalorder %s235, %s236
      %p250 = scmp.eq.s32.totalorder %s34, 1
      %p251 = por %p249, %p250
      %p253 = scmp.ne.s32.totalorder %s236, %s252
      %p254 = scmp.eq.s32.totalorder %s34, 0
      %p255 = por %p253, %p254
      %s256 = ssub.s32 %s28, %s35
      %p257 = scmp.eq.s32.totalorder %s256, 0
      %s259 = sadd.s32 %s258, 1
      %s260 = scalar_select %p257, %s258, %s259
      %p263 = pneg %p257
      %p264 = scmp.eq.s32.totalorder %s28, 1
      %p265 = por %p263, %p264
      %p266 = scmp.ne.s32.totalorder %s258, %s261
      %p267 = scmp.eq.s32.totalorder %s28, 0
      %p268 = por %p266, %p267
      %p269 = scmp.ne.s32.totalorder %s258, %s261
      %p270 = scmp.eq.s32.totalorder %s33, 1
      %p271 = por %p269, %p270
      %p272 = scmp.ne.s32.totalorder %s261, %s262
      %p273 = scmp.eq.s32.totalorder %s33, 0
      %p274 = por %p272, %p273
      %p275 = scmp.ne.s32.totalorder %s261, %s262
      %p276 = scmp.eq.s32.totalorder %s34, 1
      %p277 = por %p275, %p276
      %p279 = scmp.ne.s32.totalorder %s262, %s278
      %p280 = scmp.eq.s32.totalorder %s34, 0
      %p281 = por %p279, %p280
      %p282 = scmp.le.s32.totalorder 1, %s28
      %p283 = scmp.lt.s32.totalorder %s28, 3
      %p284 = pnand %p282, %p283
      %p285 = pneg %p284
      // Predicated region
      $region9: #{tpu_custom_call.1} parent=5 // pred_check
        _
      $region10: #{tpu_custom_call.1} parent=5 // pred_check_branch
        %287 = sbr.rel (%p284) target = $region12
      $region11: #{tpu_custom_call.1} parent=5 // pred_region
        %s288 = ssub.s32 %s28, 1
        // Predicated region
        $region13: #{tpu_custom_call.1} parent=11 // pred_check
          %p289 = pneg %p75
        $region14: #{tpu_custom_call.1} parent=11 // pred_check_branch
          %291 = sbr.rel (%p289) target = $region16
        $region15: #{tpu_custom_call.1} parent=11 // pred_region
          %s293 = ssub.s32 2048, 2048
          %294 = vsyncadd [#allocation6], %s293
          %s295 = sshll.u32 [#allocation5], 4
          %s296 = int_to_ptr.vmem [resolvable:$true] %s295
          %301 = dma.hbm_to_vmem [thread:$0]  %s1, 2048, %s296, [#allocation6], 64, 64, 4
        $region16: #{tpu_custom_call.1} parent=11 // pred_fallthru
          _
        // Predicated region
        $region17: #{tpu_custom_call.1} parent=11 // pred_check
          %p302 = pneg %p96
        $region18: #{tpu_custom_call.1} parent=11 // pred_check_branch
          %304 = sbr.rel (%p302) target = $region20
        $region19: #{tpu_custom_call.1} parent=11 // pred_region
          _
        $region20: #{tpu_custom_call.1} parent=11 // pred_fallthru
          _
        // Predicated region
        $region21: #{tpu_custom_call.1} parent=11 // pred_check
          %p305 = pneg %p117
        $region22: #{tpu_custom_call.1} parent=11 // pred_check_branch
          %307 = sbr.rel (%p305) target = $region24
        $region23: #{tpu_custom_call.1} parent=11 // pred_region
          %s309 = ssub.s32 1024, 1024
          %310 = vsyncadd [#allocation6], %s309
          %s311 = sshll.u32 [#allocation7], 4
          %s312 = int_to_ptr.vmem [resolvable:$true] %s311
          %317 = dma.hbm_to_vmem [thread:$0]  %s3, 1024, %s312, [#allocation6], 64, 64, 4
        $region24: #{tpu_custom_call.1} parent=11 // pred_fallthru
          _
        // Predicated region
        $region25: #{tpu_custom_call.1} parent=11 // pred_check
          %p318 = pneg %p138
        $region26: #{tpu_custom_call.1} parent=11 // pred_check_branch
          %320 = sbr.rel (%p318) target = $region28
        $region27: #{tpu_custom_call.1} parent=11 // pred_region
          _
        $region28: #{tpu_custom_call.1} parent=11 // pred_fallthru
          _
        // Predicated region
        $region29: #{tpu_custom_call.1} parent=11 // pred_check
          %p321 = pneg %p159
        $region30: #{tpu_custom_call.1} parent=11 // pred_check_branch
          %323 = sbr.rel (%p321) target = $region32
        $region31: #{tpu_custom_call.1} parent=11 // pred_region
          %s325 = ssub.s32 1024, 1024
          %326 = vsyncadd [#allocation9], %s325
          %s327 = sshll.u32 [#allocation8], 4
          %s328 = int_to_ptr.vmem [resolvable:$true] %s327
          %333 = dma.hbm_to_vmem [thread:$0]  %s5, 1024, %s328, [#allocation9], 64, 64, 4
        $region32: #{tpu_custom_call.1} parent=11 // pred_fallthru
          _
        // Predicated region
        $region33: #{tpu_custom_call.1} parent=11 // pred_check
          %p334 = pneg %p180
        $region34: #{tpu_custom_call.1} parent=11 // pred_check_branch
          %336 = sbr.rel (%p334) target = $region36
        $region35: #{tpu_custom_call.1} parent=11 // pred_region
          _
        $region36: #{tpu_custom_call.1} parent=11 // pred_fallthru
          _
        // Predicated region
        $region37: #{tpu_custom_call.1} parent=11 // pred_check
          %p337 = pneg %p201
        $region38: #{tpu_custom_call.1} parent=11 // pred_check_branch
          %339 = sbr.rel (%p337) target = $region40
        $region39: #{tpu_custom_call.1} parent=11 // pred_region
          %s341 = ssub.s32 2048, 2048
          %342 = vsyncadd [#allocation9], %s341
          %s343 = sshll.u32 [#allocation10], 4
          %s344 = int_to_ptr.vmem [resolvable:$true] %s343
          %349 = dma.hbm_to_vmem [thread:$0]  %s7, 2048, %s344, [#allocation9], 128, 128, 8
        $region40: #{tpu_custom_call.1} parent=11 // pred_fallthru
          _
        // Predicated region
        $region41: #{tpu_custom_call.1} parent=11 // pred_check
          %p350 = pneg %p222
        $region42: #{tpu_custom_call.1} parent=11 // pred_check_branch
          %352 = sbr.rel (%p350) target = $region44
        $region43: #{tpu_custom_call.1} parent=11 // pred_region
          _
        $region44: #{tpu_custom_call.1} parent=11 // pred_fallthru
          _
      $region12: #{tpu_custom_call.1} parent=5 // pred_fallthru
        _
      %p353 = scmp.lt.s32.totalorder %s28, 2
      // Predicated region
      $region45: #{tpu_custom_call.1} parent=5 // pred_check
        %p354 = pneg %p353
      $region46: #{tpu_custom_call.1} parent=5 // pred_check_branch
        %356 = sbr.rel (%p354) target = $region48
      $region47: #{tpu_custom_call.1} parent=5 // pred_region
        // Predicated region
        $region49: #{tpu_custom_call.1} parent=47 // pred_check
          %p357 = pneg %p48
        $region50: #{tpu_custom_call.1} parent=47 // pred_check_branch
          %359 = sbr.rel (%p357) target = $region52
        $region51: #{tpu_custom_call.1} parent=47 // pred_region
          %s360 = sand.u32 %s38, 1
          %s361 = scalar_lea.sflag [#allocation3], %s360
          %s362 = sand.u32 %s38, 1
          %s363 = smul.addr %s362, 16
          %s364 = scalar_lea.vmem [#allocation2], %s363
          %s366 = ssub.s32 256, 256
          %367 = vsyncadd %s361, %s366
          %s368 = smul.addr %s28, 2
          %s369 = smul.addr %s368, 128
          %s370 = scalar_lea.hbm %s0, %s369
          %s372 = sshll.u32 %s364, 4
          %s373 = int_to_ptr.vmem [resolvable:$true] %s372
          %375 = dma.hbm_to_vmem [thread:$0]  %s370, 256, %s373, %s361
        $region52: #{tpu_custom_call.1} parent=47 // pred_fallthru
          _
      $region48: #{tpu_custom_call.1} parent=5 // pred_fallthru
        _
      %p376 = scmp.le.s32.totalorder 1, %s28
      %p377 = scmp.lt.s32.totalorder %s28, 3
      %p378 = pnand %p376, %p377
      %p379 = pneg %p378
      // Predicated region
      $region53: #{tpu_custom_call.1} parent=5 // pred_check
        _
      $region54: #{tpu_custom_call.1} parent=5 // pred_check_branch
        %381 = sbr.rel (%p378) target = $region56
      $region55: #{tpu_custom_call.1} parent=5 // pred_region
        %s382 = ssub.s32 %s28, 1
        %s383 = sand.u32 %s41, 1
        %s384 = scalar_lea.sflag [#allocation3], %s383
        %s385 = sand.u32 %s41, 1
        %s386 = smul.addr %s385, 16
        %s387 = scalar_lea.vmem [#allocation2], %s386
        // Predicated region
        $region57: #{tpu_custom_call.1} parent=55 // pred_check
          %p388 = pneg %p54
        $region58: #{tpu_custom_call.1} parent=55 // pred_check_branch
          %390 = sbr.rel (%p388) target = $region60
        $region59: #{tpu_custom_call.1} parent=55 // pred_region
          %391 = dma.done %s384, 256
        $region60: #{tpu_custom_call.1} parent=55 // pred_fallthru
          _
        // Predicated region
        $region61: #{tpu_custom_call.1} parent=55 // pred_check
          %p392 = pneg %p75
        $region62: #{tpu_custom_call.1} parent=55 // pred_check_branch
          %394 = sbr.rel (%p392) target = $region64
        $region63: #{tpu_custom_call.1} parent=55 // pred_region
          %395 = dma.done [#allocation6], 2048
        $region64: #{tpu_custom_call.1} parent=55 // pred_fallthru
          _
        // Predicated region
        $region65: #{tpu_custom_call.1} parent=55 // pred_check
          %p396 = pneg %p117
        $region66: #{tpu_custom_call.1} parent=55 // pred_check_branch
          %398 = sbr.rel (%p396) target = $region68
        $region67: #{tpu_custom_call.1} parent=55 // pred_region
          %399 = dma.done [#allocation6], 1024
        $region68: #{tpu_custom_call.1} parent=55 // pred_fallthru
          _
        // Predicated region
        $region69: #{tpu_custom_call.1} parent=55 // pred_check
          %p400 = pneg %p159
        $region70: #{tpu_custom_call.1} parent=55 // pred_check_branch
          %402 = sbr.rel (%p400) target = $region72
        $region71: #{tpu_custom_call.1} parent=55 // pred_region
          %403 = dma.done [#allocation9], 1024
        $region72: #{tpu_custom_call.1} parent=55 // pred_fallthru
          _
        // Predicated region
        $region73: #{tpu_custom_call.1} parent=55 // pred_check
          %p404 = pneg %p201
        $region74: #{tpu_custom_call.1} parent=55 // pred_check_branch
          %406 = sbr.rel (%p404) target = $region76
        $region75: #{tpu_custom_call.1} parent=55 // pred_region
          %407 = dma.done [#allocation9], 2048
        $region76: #{tpu_custom_call.1} parent=55 // pred_fallthru
          _
        %s408 = sand.u32 %s41, 1
        %s409 = scalar_lea.sflag [#allocation3], %s408
        %s410 = sand.u32 %s41, 1
        %s411 = smul.addr %s410, 16
        %s412 = scalar_lea.vmem [#allocation2], %s411
        %p413 = pneg %p54
        %p414 = pneg %p51
        %p415 = pneg %p75
        %p416 = pneg %p72
        %p417 = pneg %p96
        %p418 = pneg %p93
        %p419 = pneg %p117
        %p420 = pneg %p114
        %p421 = pneg %p138
        %p422 = pneg %p135
        %p423 = pneg %p159
        %p424 = pneg %p156
        %p425 = pneg %p180
        %p426 = pneg %p177
        %p427 = pneg %p201
        %p428 = pneg %p198
        %p429 = pneg %p222
        %p430 = pneg %p219
        %p431 = pneg %p248
        %p432 = pneg %p245
        %s433 = sand.u32 %s235, 1
        %s434 = scalar_lea.sflag [#allocation4], %s433
        %s435 = sand.u32 %s235, 1
        %s436 = smul.addr %s435, 16
        %s437 = scalar_lea.vmem [#allocation11], %s436
        %p438 = pneg %p274
        %p439 = pneg %p271
        %s440 = sand.u32 %s261, 1
        %s441 = scalar_lea.sflag [#allocation13], %s440
        %s442 = sand.u32 %s261, 1
        %s443 = smul.addr %s442, 8
        %s444 = scalar_lea.vmem [#allocation12], %s443
        %v446 = vld [vmem:[%s387] sm:$0xff]
        %v447 = vld [vmem:[%s387 + $0x8] sm:$0xff]
        %v448 = vpack.c.bf16 %v446, %v446
        %v449 = vpack.c.bf16 %v447, %v447
        %v450 = vld [vmem:[#allocation5] sm:$0xf]
        %v451 = vld [vmem:[#allocation5 + $0x4] sm:$0xf]
        %v452 = vld [vmem:[#allocation5 + $0x8] sm:$0xf]
        %v453 = vld [vmem:[#allocation5 + $0xc] sm:$0xf]
        %v454 = vld [vmem:[#allocation5 + $0x10] sm:$0xf]
        %v455 = vld [vmem:[#allocation5 + $0x14] sm:$0xf]
        %v456 = vld [vmem:[#allocation5 + $0x18] sm:$0xf]
        %v457 = vld [vmem:[#allocation5 + $0x1c] sm:$0xf]
        %v458 = vld [vmem:[#allocation5 + $0x20] sm:$0xf]
        %v459 = vld [vmem:[#allocation5 + $0x24] sm:$0xf]
        %v460 = vld [vmem:[#allocation5 + $0x28] sm:$0xf]
        %v461 = vld [vmem:[#allocation5 + $0x2c] sm:$0xf]
        %v462 = vld [vmem:[#allocation5 + $0x30] sm:$0xf]
        %v463 = vld [vmem:[#allocation5 + $0x34] sm:$0xf]
        %v464 = vld [vmem:[#allocation5 + $0x38] sm:$0xf]
        %v465 = vld [vmem:[#allocation5 + $0x3c] sm:$0xf]
        %v466 = vld [vmem:[#allocation5 + $0x40] sm:$0xf]
        %v467 = vld [vmem:[#allocation5 + $0x44] sm:$0xf]
        %v468 = vld [vmem:[#allocation5 + $0x48] sm:$0xf]
        %v469 = vld [vmem:[#allocation5 + $0x4c] sm:$0xf]
        %v470 = vld [vmem:[#allocation5 + $0x50] sm:$0xf]
        %v471 = vld [vmem:[#allocation5 + $0x54] sm:$0xf]
        %v472 = vld [vmem:[#allocation5 + $0x58] sm:$0xf]
        %v473 = vld [vmem:[#allocation5 + $0x5c] sm:$0xf]
        %v474 = vld [vmem:[#allocation5 + $0x60] sm:$0xf]
        %v475 = vld [vmem:[#allocation5 + $0x64] sm:$0xf]
        %v476 = vld [vmem:[#allocation5 + $0x68] sm:$0xf]
        %v477 = vld [vmem:[#allocation5 + $0x6c] sm:$0xf]
        %v478 = vld [vmem:[#allocation5 + $0x70] sm:$0xf]
        %v479 = vld [vmem:[#allocation5 + $0x74] sm:$0xf]
        %v480 = vld [vmem:[#allocation5 + $0x78] sm:$0xf]
        %v481 = vld [vmem:[#allocation5 + $0x7c] sm:$0xf]
        %v482 = vld [vmem:[%s2] sm:$0x1]
        %v484 = vlaneseq
        %v485 = vshrl.u32 %v484, 7
        %v486 = vsub.s32 0, %v485
        %v487 = vrot.slane %v482, %v486
        %v521 = vunpack.c.l.b16 %v450
        %v522 = vunpack.c.l.b16 %v451
        %v523 = vunpack.c.l.b16 %v452
        %v524 = vunpack.c.l.b16 %v453
        %v525 = vunpack.c.l.b16 %v454
        %v526 = vunpack.c.l.b16 %v455
        %v527 = vunpack.c.l.b16 %v456
        %v528 = vunpack.c.l.b16 %v457
        %v529 = vunpack.c.l.b16 %v458
        %v530 = vunpack.c.l.b16 %v459
        %v531 = vunpack.c.l.b16 %v460
        %v532 = vunpack.c.l.b16 %v461
        %v533 = vunpack.c.l.b16 %v462
        %v534 = vunpack.c.l.b16 %v463
        %v535 = vunpack.c.l.b16 %v464
        %v536 = vunpack.c.l.b16 %v465
        %v537 = vunpack.c.l.b16 %v466
        %v538 = vunpack.c.l.b16 %v467
        %v539 = vunpack.c.l.b16 %v468
        %v540 = vunpack.c.l.b16 %v469
        %v541 = vunpack.c.l.b16 %v470
        %v542 = vunpack.c.l.b16 %v471
        %v543 = vunpack.c.l.b16 %v472
        %v544 = vunpack.c.l.b16 %v473
        %v545 = vunpack.c.l.b16 %v474
        %v546 = vunpack.c.l.b16 %v475
        %v547 = vunpack.c.l.b16 %v476
        %v548 = vunpack.c.l.b16 %v477
        %v549 = vunpack.c.l.b16 %v478
        %v550 = vunpack.c.l.b16 %v479
        %v551 = vunpack.c.l.b16 %v480
        %v552 = vunpack.c.l.b16 %v481
        %v553 = vpack.c.b16 %v522, %v521
        %v554 = vpack.c.b16 %v524, %v523
        %v555 = vpack.c.b16 %v526, %v525
        %v556 = vpack.c.b16 %v528, %v527
        %v557 = vpack.c.b16 %v530, %v529
        %v558 = vpack.c.b16 %v532, %v531
        %v559 = vpack.c.b16 %v534, %v533
        %v560 = vpack.c.b16 %v536, %v535
        %v561 = vpack.c.b16 %v538, %v537
        %v562 = vpack.c.b16 %v540, %v539
        %v563 = vpack.c.b16 %v542, %v541
        %v564 = vpack.c.b16 %v544, %v543
        %v565 = vpack.c.b16 %v546, %v545
        %v566 = vpack.c.b16 %v548, %v547
        %v567 = vpack.c.b16 %v550, %v549
        %v568 = vpack.c.b16 %v552, %v551
        %585 = vmatprep.subr.bf16.mxu0 0
        %586 = vmatpush1.bf16.msra.mxu0 %v553
        %587 = vmatprep.subr.bf16.mxu0 0
        %588 = vmatpush1.bf16.msra.mxu0 %v554
        %589 = vmatprep.subr.bf16.mxu0 0
        %590 = vmatpush1.bf16.msra.mxu0 %v555
        %591 = vmatprep.subr.bf16.mxu0 0
        %592 = vmatpush1.bf16.msra.mxu0 %v556
        %593 = vmatprep.subr.bf16.mxu0 0
        %594 = vmatpush1.bf16.msra.mxu0 %v557
        %595 = vmatprep.subr.bf16.mxu0 0
        %596 = vmatpush1.bf16.msra.mxu0 %v558
        %597 = vmatprep.subr.bf16.mxu0 0
        %598 = vmatpush1.bf16.msra.mxu0 %v559
        %599 = vmatprep.subr.bf16.mxu0 0
        %600 = vmatpush1.bf16.msra.mxu0 %v560
        %601 = vmatprep.subr.bf16.mxu0 0
        %602 = vmatpush1.bf16.msra.mxu0 %v561
        %603 = vmatprep.subr.bf16.mxu0 0
        %604 = vmatpush1.bf16.msra.mxu0 %v562
        %605 = vmatprep.subr.bf16.mxu0 0
        %606 = vmatpush1.bf16.msra.mxu0 %v563
        %607 = vmatprep.subr.bf16.mxu0 0
        %608 = vmatpush1.bf16.msra.mxu0 %v564
        %609 = vmatprep.subr.bf16.mxu0 0
        %610 = vmatpush1.bf16.msra.mxu0 %v565
        %611 = vmatprep.subr.bf16.mxu0 0
        %612 = vmatpush1.bf16.msra.mxu0 %v566
        %613 = vmatprep.subr.bf16.mxu0 0
        %614 = vmatpush1.bf16.msra.mxu0 %v567
        %615 = vmatprep.subr.bf16.mxu0 0
        %616 = vmatpush1.bf16.msra.mxu0 %v568
        %617 = vmatprep.mubr.bf16.mxu0 %v449
        %618 = vmatmul.mubr.bf16.gmra.mrb[0].mxu0 %v448
        %v619 = vpop.f32.mrb[0].mxu0
        %v620 = vadd.f32 %v487, %v619
        %v621 = vpop.f32.mrb[0].mxu0
        %v622 = vpop.f32.mrb[0].mxu0
        %v623 = vpop.f32.mrb[0].mxu0
        %624 = vdwg.mxu0
        %v625 = vpack.c.bf16 %v620, %v620
        %v626 = vld [vmem:[#allocation7] sm:$0xf]
        %v627 = vld [vmem:[#allocation7 + $0x4] sm:$0xf]
        %v628 = vld [vmem:[#allocation7 + $0x8] sm:$0xf]
        %v629 = vld [vmem:[#allocation7 + $0xc] sm:$0xf]
        %v630 = vld [vmem:[#allocation7 + $0x10] sm:$0xf]
        %v631 = vld [vmem:[#allocation7 + $0x14] sm:$0xf]
        %v632 = vld [vmem:[#allocation7 + $0x18] sm:$0xf]
        %v633 = vld [vmem:[#allocation7 + $0x1c] sm:$0xf]
        %v634 = vld [vmem:[#allocation7 + $0x20] sm:$0xf]
        %v635 = vld [vmem:[#allocation7 + $0x24] sm:$0xf]
        %v636 = vld [vmem:[#allocation7 + $0x28] sm:$0xf]
        %v637 = vld [vmem:[#allocation7 + $0x2c] sm:$0xf]
        %v638 = vld [vmem:[#allocation7 + $0x30] sm:$0xf]
        %v639 = vld [vmem:[#allocation7 + $0x34] sm:$0xf]
        %v640 = vld [vmem:[#allocation7 + $0x38] sm:$0xf]
        %v641 = vld [vmem:[#allocation7 + $0x3c] sm:$0xf]
        %v642 = vld [vmem:[%s4] sm:$0x1]
        %v644 = vlaneseq
        %v645 = vshrl.u32 %v644, 7
        %v646 = vsub.s32 0, %v645
        %v647 = vrot.slane %v642, %v646
        %v665 = vunpack.c.l.b16 %v626
        %v666 = vunpack.c.l.b16 %v627
        %v667 = vunpack.c.l.b16 %v628
        %v668 = vunpack.c.l.b16 %v629
        %v669 = vunpack.c.l.b16 %v630
        %v670 = vunpack.c.l.b16 %v631
        %v671 = vunpack.c.l.b16 %v632
        %v672 = vunpack.c.l.b16 %v633
        %v673 = vunpack.c.l.b16 %v634
        %v674 = vunpack.c.l.b16 %v635
        %v675 = vunpack.c.l.b16 %v636
        %v676 = vunpack.c.l.b16 %v637
        %v677 = vunpack.c.l.b16 %v638
        %v678 = vunpack.c.l.b16 %v639
        %v679 = vunpack.c.l.b16 %v640
        %v680 = vunpack.c.l.b16 %v641
        %v681 = vpack.c.b16 %v666, %v665
        %v682 = vpack.c.b16 %v668, %v667
        %v683 = vpack.c.b16 %v670, %v669
        %v684 = vpack.c.b16 %v672, %v671
        %v685 = vpack.c.b16 %v674, %v673
        %v686 = vpack.c.b16 %v676, %v675
        %v687 = vpack.c.b16 %v678, %v677
        %v688 = vpack.c.b16 %v680, %v679
        %697 = vmatprep.subr.bf16.mxu0 0
        %698 = vmatpush1.bf16.msra.mxu0 %v681
        %699 = vmatprep.subr.bf16.mxu0 0
        %700 = vmatpush1.bf16.msra.mxu0 %v682
        %701 = vmatprep.subr.bf16.mxu0 0
        %702 = vmatpush1.bf16.msra.mxu0 %v683
        %703 = vmatprep.subr.bf16.mxu0 0
        %704 = vmatpush1.bf16.msra.mxu0 %v684
        %705 = vmatprep.subr.bf16.mxu0 0
        %706 = vmatpush1.bf16.msra.mxu0 %v685
        %707 = vmatprep.subr.bf16.mxu0 0
        %708 = vmatpush1.bf16.msra.mxu0 %v686
        %709 = vmatprep.subr.bf16.mxu0 0
        %710 = vmatpush1.bf16.msra.mxu0 %v687
        %711 = vmatprep.subr.bf16.mxu0 0
        %712 = vmatpush1.bf16.msra.mxu0 %v688
        %713 = vmatprep.subr.bf16.mxu0 0
        %714 = vmatpush1.bf16.msra.mxu0 0
        %715 = vmatprep.subr.bf16.mxu0 0
        %716 = vmatpush1.bf16.msra.mxu0 0
        %717 = vmatprep.subr.bf16.mxu0 0
        %718 = vmatpush1.bf16.msra.mxu0 0
        %719 = vmatprep.subr.bf16.mxu0 0
        %720 = vmatpush1.bf16.msra.mxu0 0
        %721 = vmatprep.subr.bf16.mxu0 0
        %722 = vmatpush1.bf16.msra.mxu0 0
        %723 = vmatprep.subr.bf16.mxu0 0
        %724 = vmatpush1.bf16.msra.mxu0 0
        %725 = vmatprep.subr.bf16.mxu0 0
        %726 = vmatpush1.bf16.msra.mxu0 0
        %727 = vmatprep.subr.bf16.mxu0 0
        %728 = vmatpush1.bf16.msra.mxu0 0
        %729 = vmatprep.mubr.bf16.mxu0 0
        %730 = vmatmul.mubr.bf16.gmra.mrb[0].mxu0 %v625
        %v731 = vpop.f32.mrb[0].mxu0
        %v732 = vadd.f32 %v647, %v731
        %v733 = vpop.f32.mrb[0].mxu0
        %v734 = vpop.f32.mrb[0].mxu0
        %v735 = vpop.f32.mrb[0].mxu0
        %736 = vdwg.mxu0
        %vm737 = vcmp.gt.f32.partialorder %v732, 0.0
        %v738 = vmul.f32 %v732, 0.01
        %v739 = vsel %vm737, %v732, %v738
        %v740 = vpack.c.bf16 %v739, %v739
        %v741 = vld [vmem:[#allocation8] sm:$0xf]
        %v742 = vld [vmem:[#allocation8 + $0x4] sm:$0xf]
        %v743 = vld [vmem:[#allocation8 + $0x8] sm:$0xf]
        %v744 = vld [vmem:[#allocation8 + $0xc] sm:$0xf]
        %v745 = vld [vmem:[#allocation8 + $0x10] sm:$0xf]
        %v746 = vld [vmem:[#allocation8 + $0x14] sm:$0xf]
        %v747 = vld [vmem:[#allocation8 + $0x18] sm:$0xf]
        %v748 = vld [vmem:[#allocation8 + $0x1c] sm:$0xf]
        %v749 = vld [vmem:[#allocation8 + $0x20] sm:$0xf]
        %v750 = vld [vmem:[#allocation8 + $0x24] sm:$0xf]
        %v751 = vld [vmem:[#allocation8 + $0x28] sm:$0xf]
        %v752 = vld [vmem:[#allocation8 + $0x2c] sm:$0xf]
        %v753 = vld [vmem:[#allocation8 + $0x30] sm:$0xf]
        %v754 = vld [vmem:[#allocation8 + $0x34] sm:$0xf]
        %v755 = vld [vmem:[#allocation8 + $0x38] sm:$0xf]
        %v756 = vld [vmem:[#allocation8 + $0x3c] sm:$0xf]
        %v757 = vld [vmem:[%s6] sm:$0x1]
        %v759 = vlaneseq
        %v760 = vshrl.u32 %v759, 7
        %v761 = vsub.s32 0, %v760
        %v762 = vrot.slane %v757, %v761
        %v780 = vunpack.c.l.b16 %v741
        %v781 = vunpack.c.l.b16 %v742
        %v782 = vunpack.c.l.b16 %v743
        %v783 = vunpack.c.l.b16 %v744
        %v784 = vunpack.c.l.b16 %v745
        %v785 = vunpack.c.l.b16 %v746
        %v786 = vunpack.c.l.b16 %v747
        %v787 = vunpack.c.l.b16 %v748
        %v788 = vunpack.c.l.b16 %v749
        %v789 = vunpack.c.l.b16 %v750
        %v790 = vunpack.c.l.b16 %v751
        %v791 = vunpack.c.l.b16 %v752
        %v792 = vunpack.c.l.b16 %v753
        %v793 = vunpack.c.l.b16 %v754
        %v794 = vunpack.c.l.b16 %v755
        %v795 = vunpack.c.l.b16 %v756
        %v796 = vpack.c.b16 %v781, %v780
        %v797 = vpack.c.b16 %v783, %v782
        %v798 = vpack.c.b16 %v785, %v784
        %v799 = vpack.c.b16 %v787, %v786
        %v800 = vpack.c.b16 %v789, %v788
        %v801 = vpack.c.b16 %v791, %v790
        %v802 = vpack.c.b16 %v793, %v792
        %v803 = vpack.c.b16 %v795, %v794
        %812 = vmatprep.subr.bf16.mxu0 0
        %813 = vmatpush1.bf16.msra.mxu0 %v796
        %814 = vmatprep.subr.bf16.mxu0 0
        %815 = vmatpush1.bf16.msra.mxu0 %v797
        %816 = vmatprep.subr.bf16.mxu0 0
        %817 = vmatpush1.bf16.msra.mxu0 %v798
        %818 = vmatprep.subr.bf16.mxu0 0
        %819 = vmatpush1.bf16.msra.mxu0 %v799
        %820 = vmatprep.subr.bf16.mxu0 0
        %821 = vmatpush1.bf16.msra.mxu0 %v800
        %822 = vmatprep.subr.bf16.mxu0 0
        %823 = vmatpush1.bf16.msra.mxu0 %v801
        %824 = vmatprep.subr.bf16.mxu0 0
        %825 = vmatpush1.bf16.msra.mxu0 %v802
        %826 = vmatprep.subr.bf16.mxu0 0
        %827 = vmatpush1.bf16.msra.mxu0 %v803
        %828 = vmatprep.subr.bf16.mxu0 0
        %829 = vmatpush1.bf16.msra.mxu0 0
        %830 = vmatprep.subr.bf16.mxu0 0
        %831 = vmatpush1.bf16.msra.mxu0 0
        %832 = vmatprep.subr.bf16.mxu0 0
        %833 = vmatpush1.bf16.msra.mxu0 0
        %834 = vmatprep.subr.bf16.mxu0 0
        %835 = vmatpush1.bf16.msra.mxu0 0
        %836 = vmatprep.subr.bf16.mxu0 0
        %837 = vmatpush1.bf16.msra.mxu0 0
        %838 = vmatprep.subr.bf16.mxu0 0
        %839 = vmatpush1.bf16.msra.mxu0 0
        %840 = vmatprep.subr.bf16.mxu0 0
        %841 = vmatpush1.bf16.msra.mxu0 0
        %842 = vmatprep.subr.bf16.mxu0 0
        %843 = vmatpush1.bf16.msra.mxu0 0
        %844 = vmatprep.mubr.bf16.mxu0 0
        %845 = vmatmul.mubr.bf16.gmra.mrb[0].mxu0 %v740
        %v846 = vpop.f32.mrb[0].mxu0
        %v847 = vadd.f32 %v762, %v846
        %v848 = vpop.f32.mrb[0].mxu0
        %v849 = vpop.f32.mrb[0].mxu0
        %v850 = vpop.f32.mrb[0].mxu0
        %851 = vdwg.mxu0
        %v852 = vpack.c.bf16 %v847, %v847
        %v853 = vld [vmem:[#allocation10] sm:$0xff]
        %v854 = vld [vmem:[#allocation10 + $0x8] sm:$0xff]
        %v855 = vld [vmem:[#allocation10 + $0x10] sm:$0xff]
        %v856 = vld [vmem:[#allocation10 + $0x18] sm:$0xff]
        %v857 = vld [vmem:[#allocation10 + $0x20] sm:$0xff]
        %v858 = vld [vmem:[#allocation10 + $0x28] sm:$0xff]
        %v859 = vld [vmem:[#allocation10 + $0x30] sm:$0xff]
        %v860 = vld [vmem:[#allocation10 + $0x38] sm:$0xff]
        %v861 = vld [vmem:[#allocation10 + $0x40] sm:$0xff]
        %v862 = vld [vmem:[#allocation10 + $0x48] sm:$0xff]
        %v863 = vld [vmem:[#allocation10 + $0x50] sm:$0xff]
        %v864 = vld [vmem:[#allocation10 + $0x58] sm:$0xff]
        %v865 = vld [vmem:[#allocation10 + $0x60] sm:$0xff]
        %v866 = vld [vmem:[#allocation10 + $0x68] sm:$0xff]
        %v867 = vld [vmem:[#allocation10 + $0x70] sm:$0xff]
        %v868 = vld [vmem:[#allocation10 + $0x78] sm:$0xff]
        %v869 = vld [vmem:[%s8] sm:$0x3]
        %v871 = vlaneseq
        %v872 = vshrl.u32 %v871, 7
        %v873 = vsub.s32 0, %v872
        %v874 = vrot.slane %v869, %v873
        %v875 = vlaneseq
        %v876 = vshrl.u32 %v875, 7
        %v877 = vsub.s32 1, %v876
        %v878 = vrot.slane %v869, %v877
        %v897 = vunpack.c.l.b16 %v853
        %v898 = vunpack.c.h.b16 %v853
        %v899 = vunpack.c.l.b16 %v854
        %v900 = vunpack.c.h.b16 %v854
        %v901 = vunpack.c.l.b16 %v855
        %v902 = vunpack.c.h.b16 %v855
        %v903 = vunpack.c.l.b16 %v856
        %v904 = vunpack.c.h.b16 %v856
        %v905 = vunpack.c.l.b16 %v857
        %v906 = vunpack.c.h.b16 %v857
        %v907 = vunpack.c.l.b16 %v858
        %v908 = vunpack.c.h.b16 %v858
        %v909 = vunpack.c.l.b16 %v859
        %v910 = vunpack.c.h.b16 %v859
        %v911 = vunpack.c.l.b16 %v860
        %v912 = vunpack.c.h.b16 %v860
        %v913 = vunpack.c.l.b16 %v861
        %v914 = vunpack.c.h.b16 %v861
        %v915 = vunpack.c.l.b16 %v862
        %v916 = vunpack.c.h.b16 %v862
        %v917 = vunpack.c.l.b16 %v863
        %v918 = vunpack.c.h.b16 %v863
        %v919 = vunpack.c.l.b16 %v864
        %v920 = vunpack.c.h.b16 %v864
        %v921 = vunpack.c.l.b16 %v865
        %v922 = vunpack.c.h.b16 %v865
        %v923 = vunpack.c.l.b16 %v866
        %v924 = vunpack.c.h.b16 %v866
        %v925 = vunpack.c.l.b16 %v867
        %v926 = vunpack.c.h.b16 %v867
        %v927 = vunpack.c.l.b16 %v868
        %v928 = vunpack.c.h.b16 %v868
        %v929 = vpack.c.b16 %v899, %v897
        %v930 = vpack.c.b16 %v900, %v898
        %v931 = vpack.c.b16 %v903, %v901
        %v932 = vpack.c.b16 %v904, %v902
        %v933 = vpack.c.b16 %v907, %v905
        %v934 = vpack.c.b16 %v908, %v906
        %v935 = vpack.c.b16 %v911, %v909
        %v936 = vpack.c.b16 %v912, %v910
        %v937 = vpack.c.b16 %v915, %v913
        %v938 = vpack.c.b16 %v916, %v914
        %v939 = vpack.c.b16 %v919, %v917
        %v940 = vpack.c.b16 %v920, %v918
        %v941 = vpack.c.b16 %v923, %v921
        %v942 = vpack.c.b16 %v924, %v922
        %v943 = vpack.c.b16 %v927, %v925
        %v944 = vpack.c.b16 %v928, %v926
        %961 = vmatprep.subr.bf16.mxu0 %v930
        %962 = vmatpush1.bf16.msra.mxu0 %v929
        %963 = vmatprep.subr.bf16.mxu0 %v932
        %964 = vmatpush1.bf16.msra.mxu0 %v931
        %965 = vmatprep.subr.bf16.mxu0 %v934
        %966 = vmatpush1.bf16.msra.mxu0 %v933
        %967 = vmatprep.subr.bf16.mxu0 %v936
        %968 = vmatpush1.bf16.msra.mxu0 %v935
        %969 = vmatprep.subr.bf16.mxu0 %v938
        %970 = vmatpush1.bf16.msra.mxu0 %v937
        %971 = vmatprep.subr.bf16.mxu0 %v940
        %972 = vmatpush1.bf16.msra.mxu0 %v939
        %973 = vmatprep.subr.bf16.mxu0 %v942
        %974 = vmatpush1.bf16.msra.mxu0 %v941
        %975 = vmatprep.subr.bf16.mxu0 %v944
        %976 = vmatpush1.bf16.msra.mxu0 %v943
        %977 = vmatprep.subr.bf16.mxu0 0
        %978 = vmatpush1.bf16.msra.mxu0 0
        %979 = vmatprep.subr.bf16.mxu0 0
        %980 = vmatpush1.bf16.msra.mxu0 0
        %981 = vmatprep.subr.bf16.mxu0 0
        %982 = vmatpush1.bf16.msra.mxu0 0
        %983 = vmatprep.subr.bf16.mxu0 0
        %984 = vmatpush1.bf16.msra.mxu0 0
        %985 = vmatprep.subr.bf16.mxu0 0
        %986 = vmatpush1.bf16.msra.mxu0 0
        %987 = vmatprep.subr.bf16.mxu0 0
        %988 = vmatpush1.bf16.msra.mxu0 0
        %989 = vmatprep.subr.bf16.mxu0 0
        %990 = vmatpush1.bf16.msra.mxu0 0
        %991 = vmatprep.subr.bf16.mxu0 0
        %992 = vmatpush1.bf16.msra.mxu0 0
        %993 = vmatprep.mubr.bf16.mxu0 0
        %994 = vmatmul.mubr.bf16.gmra.mrb[0].mxu0 %v852
        %v995 = vpop.f32.mrb[0].mxu0
        %v996 = vadd.f32 %v874, %v995
        %v997 = vpop.f32.mrb[0].mxu0
        %v998 = vadd.f32 %v878, %v997
        %v999 = vpop.f32.mrb[0].mxu0
        %v1000 = vpop.f32.mrb[0].mxu0
        %1001 = vdwg.mxu0
        %vm1002 = vcmp.gt.f32.partialorder %v996, 0.0
        %vm1003 = vcmp.gt.f32.partialorder %v998, 0.0
        %v1004 = vmul.f32 %v996, 0.01
        %v1005 = vmul.f32 %v998, 0.01
        %v1006 = vsel %vm1002, %v996, %v1004
        %v1007 = vsel %vm1003, %v998, %v1005
        %1008 = vst [vmem:[%s437] sm:$0xff] %v1006
        %1009 = vst [vmem:[%s437 + $0x8] sm:$0xff] %v1007
        %1010 = vst [vmem:[%s444] sm:$0xff] %v739
        %s1011 = sand.u32 %s235, 1
        %s1012 = scalar_lea.sflag [#allocation4], %s1011
        %s1013 = sand.u32 %s235, 1
        %s1014 = smul.addr %s1013, 16
        %s1015 = scalar_lea.vmem [#allocation11], %s1014
        %s1016 = sand.u32 %s261, 1
        %s1017 = scalar_lea.sflag [#allocation13], %s1016
        %s1018 = sand.u32 %s261, 1
        %s1019 = smul.addr %s1018, 8
        %s1020 = scalar_lea.vmem [#allocation12], %s1019
        // Predicated region
        $region77: #{tpu_custom_call.1} parent=55 // pred_check
          %p1021 = pneg %p245
        $region78: #{tpu_custom_call.1} parent=55 // pred_check_branch
          %1023 = sbr.rel (%p1021) target = $region80
        $region79: #{tpu_custom_call.1} parent=55 // pred_region
          %s1025 = ssub.s32 256, 256
          %1026 = vsyncadd %s1012, %s1025
          %s1027 = smul.addr %s33, 2
          %s1028 = smul.addr %s1027, 128
          %s1029 = scalar_lea.hbm %s9, %s1028
          %s1031 = sshll.u32 %s1015, 4
          %s1032 = int_to_ptr.vmem [resolvable:$true] %s1031
          %1034 = dma.vmem_to_hbm [thread:$0]  %s1032, 256, %s1029, %s1012
        $region80: #{tpu_custom_call.1} parent=55 // pred_fallthru
          _
        // Predicated region
        $region81: #{tpu_custom_call.1} parent=55 // pred_check
          %p1035 = pneg %p271
        $region82: #{tpu_custom_call.1} parent=55 // pred_check_branch
          %1037 = sbr.rel (%p1035) target = $region84
        $region83: #{tpu_custom_call.1} parent=55 // pred_region
          %s1039 = ssub.s32 128, 128
          %1040 = vsyncadd %s1017, %s1039
          %s1041 = smul.addr %s33, 128
          %s1042 = scalar_lea.hbm %s10, %s1041
          %s1044 = sshll.u32 %s1020, 4
          %s1045 = int_to_ptr.vmem [resolvable:$true] %s1044
          %1047 = dma.vmem_to_hbm [thread:$0]  %s1045, 128, %s1042, %s1017
        $region84: #{tpu_custom_call.1} parent=55 // pred_fallthru
          _
      $region56: #{tpu_custom_call.1} parent=5 // pred_fallthru
        _
      %p1048 = scmp.le.s32.totalorder 2, %s28
      // Predicated region
      $region85: #{tpu_custom_call.1} parent=5 // pred_check
        %p1049 = pneg %p1048
      $region86: #{tpu_custom_call.1} parent=5 // pred_check_branch
        %1051 = sbr.rel (%p1049) target = $region88
      $region87: #{tpu_custom_call.1} parent=5 // pred_region
        %s1052 = ssub.s32 %s28, 2
        // Predicated region
        $region89: #{tpu_custom_call.1} parent=87 // pred_check
          %p1053 = pneg %p251
        $region90: #{tpu_custom_call.1} parent=87 // pred_check_branch
          %1055 = sbr.rel (%p1053) target = $region92
        $region91: #{tpu_custom_call.1} parent=87 // pred_region
          %s1056 = sand.u32 %s236, 1
          %s1057 = scalar_lea.sflag [#allocation4], %s1056
          %s1058 = sand.u32 %s236, 1
          %s1059 = smul.addr %s1058, 16
          %s1060 = scalar_lea.vmem [#allocation11], %s1059
          %1061 = dma.done %s1057, 256
        $region92: #{tpu_custom_call.1} parent=87 // pred_fallthru
          _
        // Predicated region
        $region93: #{tpu_custom_call.1} parent=87 // pred_check
          %p1062 = pneg %p277
        $region94: #{tpu_custom_call.1} parent=87 // pred_check_branch
          %1064 = sbr.rel (%p1062) target = $region96
        $region95: #{tpu_custom_call.1} parent=87 // pred_region
          %s1065 = sand.u32 %s262, 1
          %s1066 = scalar_lea.sflag [#allocation13], %s1065
          %s1067 = sand.u32 %s262, 1
          %s1068 = smul.addr %s1067, 8
          %s1069 = scalar_lea.vmem [#allocation12], %s1068
          %1070 = dma.done %s1066, 128
        $region96: #{tpu_custom_call.1} parent=87 // pred_fallthru
          _
      $region88: #{tpu_custom_call.1} parent=5 // pred_fallthru
        _
    $region6: #{tpu_custom_call.1} parent=1 // loop_footer
      %s32 = sadd.s32 1, %s28
    $region7: #{tpu_custom_call.1} parent=1 // loop_footer_branch
      %27 = sbr.rel target = $region3
    $region8: #{tpu_custom_call.1} parent=1 // loop_exit
      _
    %1071 = vsyncpa [#allocation3], 1
    %s1072 = scalar_lea.sflag [#allocation3], 1
    %1073 = vsyncpa %s1072, 1
    %1074 = vsyncpa [#allocation6], 1
    %1075 = vsyncpa [#allocation9], 1
    %1076 = vsyncpa [#allocation4], 1
    %s1077 = scalar_lea.sflag [#allocation4], 1
    %1078 = vsyncpa %s1077, 1
    %1079 = vsyncpa [#allocation13], 1
    %s1080 = scalar_lea.sflag [#allocation13], 1
    %1081 = vsyncpa %s1080, 1

</llo_original>
